<compile_context>
chip_gen: v5e
topology: v5e:2x2
jax: 0.10.0
libtpu: 0.0.40
codegen_flags: <defaults>
</compile_context>

<pallas_src>
import jax
import jax.numpy as jnp
from jax.experimental import pallas as pl
from jax.experimental.pallas import tpu as pltpu

# ---- stand-in for phobert_config (small, deterministic, synthetic) ----------
HIDDEN_SIZE = 32       # config['hidden_size']
NUM_LAYERS = 2         # config['num_layers']
NUM_CLASSES = 3
INPUT_DIM = 64         # input_shape[-1]
BATCH = 2
PADDED_CLASSES = 128   # lane-dense output width; real classes live in [:, :3]


# ----------------------------- fused Pallas kernel ----------------------------
def _make_fused_kernel(num_layers, hidden):
    """Kernel over refs: (x, [w_l, b_l]*L, w1, b1, w2, b2, w3, b3, out)."""
    def kernel(*refs):
        x_ref = refs[0]
        out_ref = refs[-1]
        H2 = 2 * hidden

        h = x_ref[...]                                            # [B, D_in]
        idx = 1
        for _ in range(num_layers):
            w_ref, b_ref = refs[idx], refs[idx + 1]
            idx += 2
            # One matmul for both directions; columns ordered
            # [i_fwd|i_bwd | g_fwd|g_bwd | o_fwd|o_bwd] (f-gate pre-removed).
            gates = (jnp.dot(h, w_ref[...],
                             preferred_element_type=jnp.float32) + b_ref[...])
            i = jax.nn.sigmoid(gates[:, 0 * H2:1 * H2])
            g = jnp.tanh(gates[:, 1 * H2:2 * H2])
            o = jax.nn.sigmoid(gates[:, 2 * H2:3 * H2])
            # seq_len == 1, h0 == c0 == 0  =>  c = i * g, W_hh term is zero.
            # Column order already yields concat(h_fwd, h_bwd) with no shuffle.
            h = o * jnp.tanh(i * g)                               # [B, 2H]

        # attention_layer: Linear(2H,1) -> softmax over a size-1 axis (== 1.0)
        # -> elementwise scale  ==> exact identity; skipped.
        # TODO(synk): nn.Dropout is identity in eval mode; no RNG dropout applied.
        w1_ref, b1_ref, w2_ref, b2_ref, w3_ref, b3_ref = refs[idx:idx + 6]
        z = jnp.dot(h, w1_ref[...], preferred_element_type=jnp.float32) + b1_ref[...]
        z = jnp.dot(z, w2_ref[...], preferred_element_type=jnp.float32) + b2_ref[...]
        z = jnp.dot(z, w3_ref[...], preferred_element_type=jnp.float32) + b3_ref[...]
        # fc3 padded to 128 lanes with zero weight cols and -1e30 bias: the
        # padded exps underflow to 0, so this softmax equals the 3-class one.
        out_ref[...] = jax.nn.softmax(z, axis=1)

    return kernel


# ----------------------------- wrapper ----------------------------------------
def attention_bilstm_forward(x, pp):
    """Single fused pallas_call for the full forward pass."""
    args = [x]
    for w, b in pp['lstm']:
        args += [w, b]
    args += [pp['fc1_w'], pp['fc1_b'], pp['fc2_w'], pp['fc2_b'],
             pp['fc3_w'], pp['fc3_b']]

    B = x.shape[0]
    kernel = _make_fused_kernel(len(pp['lstm']), HIDDEN_SIZE)
    out_padded = pl.pallas_call(
        kernel,
        out_shape=jax.ShapeDtypeStruct((B, PADDED_CLASSES), jnp.float32),
        in_specs=[pl.BlockSpec(memory_space=pltpu.MemorySpace.VMEM)
                  for _ in args],
        out_specs=pl.BlockSpec(memory_space=pltpu.MemorySpace.VMEM),
    )(*args)
    return out_padded[:, :NUM_CLASSES]


# ----------------------------- one-time param preprocessing -------------------
def preprocess_params(params):
    """Pre-transpose / stack / fuse weights once, outside the forward path."""
    H = HIDDEN_SIZE
    pp = {'lstm': []}
    for lp in params['lstm']:
        w_cols, b_cols = [], []
        # PyTorch gate row order is (i, f, g, o); f is dead because c0 == 0.
        for gate in (0, 2, 3):                     # i, g, o
            for d in ('fwd', 'bwd'):
                p = lp[d]
                rows = slice(gate * H, (gate + 1) * H)
                w_cols.append(p['w_ih'][rows, :])
                b_cols.append(p['b_ih'][rows] + p['b_hh'][rows])
        w = jnp.concatenate(w_cols, axis=0).T      # [D_in, 6H], pre-transposed
        b = jnp.concatenate(b_cols)[None, :]       # [1, 6H], b_ih + b_hh fused
        pp['lstm'].append((w, b))
        # W_hh is intentionally dropped: it multiplies h0 == 0 (seq_len == 1).

    pp['fc1_w'] = params['fc1_w'].T                # [2H, 256]
    pp['fc1_b'] = params['fc1_b'][None, :]
    pp['fc2_w'] = params['fc2_w'].T                # [256, 128]
    pp['fc2_b'] = params['fc2_b'][None, :]
    pad = PADDED_CLASSES - NUM_CLASSES
    pp['fc3_w'] = jnp.pad(params['fc3_w'].T, ((0, 0), (0, pad)))   # [128, 128]
    pp['fc3_b'] = jnp.pad(params['fc3_b'], (0, pad),
                          constant_values=-1e30)[None, :]          # [1, 128]
    return pp


# ----------------------------- reference (pure JAX, unsimplified) -------------
def reference_forward(x, params):
    H = HIDDEN_SIZE
    B = x.shape[0]
    h_in = x
    for lp in params['lstm']:
        outs = []
        for d in ('fwd', 'bwd'):                   # seq_len == 1: both see x
            p = lp[d]
            h0 = jnp.zeros((B, H), jnp.float32)
            c0 = jnp.zeros((B, H), jnp.float32)
            gates = (h_in @ p['w_ih'].T + p['b_ih']
                     + h0 @ p['w_hh'].T + p['b_hh'])
            i = jax.nn.sigmoid(gates[:, 0 * H:1 * H])
            f = jax.nn.sigmoid(gates[:, 1 * H:2 * H])
            g = jnp.tanh(gates[:, 2 * H:3 * H])
            o = jax.nn.sigmoid(gates[:, 3 * H:4 * H])
            c = f * c0 + i * g
            outs.append(o * jnp.tanh(c))
        h_in = jnp.concatenate(outs, axis=-1)      # [B, 2H]
    scores = h_in @ params['attn_w'].T + params['attn_b']   # [B, 1]
    attn = jax.nn.softmax(scores, axis=1)                   # size-1 axis -> 1.0
    z = attn * h_in
    z = z @ params['fc1_w'].T + params['fc1_b']
    z = z @ params['fc2_w'].T + params['fc2_b']
    z = z @ params['fc3_w'].T + params['fc3_b']
    return jax.nn.softmax(z, axis=1)


# ----------------------------- params ----------------------------------------
def init_params(key):
    params = {'lstm': []}
    k_lstm = 1.0 / float(jnp.sqrt(HIDDEN_SIZE))
    for layer in range(NUM_LAYERS):
        d_in = INPUT_DIM if layer == 0 else 2 * HIDDEN_SIZE
        layer_p = {}
        for direction in ('fwd', 'bwd'):
            key, k1, k2, k3, k4 = jax.random.split(key, 5)
            layer_p[direction] = dict(
                w_ih=jax.random.uniform(k1, (4 * HIDDEN_SIZE, d_in),
                                        minval=-k_lstm, maxval=k_lstm,
                                        dtype=jnp.float32),
                w_hh=jax.random.uniform(k4, (4 * HIDDEN_SIZE, HIDDEN_SIZE),
                                        minval=-k_lstm, maxval=k_lstm,
                                        dtype=jnp.float32),
                b_ih=jax.random.uniform(k2, (4 * HIDDEN_SIZE,),
                                        minval=-k_lstm, maxval=k_lstm,
                                        dtype=jnp.float32),
                b_hh=jax.random.uniform(k3, (4 * HIDDEN_SIZE,),
                                        minval=-k_lstm, maxval=k_lstm,
                                        dtype=jnp.float32),
            )
        params['lstm'].append(layer_p)

    def linear(key, out_dim, in_dim):
        k = 1.0 / float(jnp.sqrt(in_dim))
        kw, kb = jax.random.split(key)
        w = jax.random.uniform(kw, (out_dim, in_dim), minval=-k, maxval=k,
                               dtype=jnp.float32)
        b = jax.random.uniform(kb, (out_dim,), minval=-k, maxval=k,
                               dtype=jnp.float32)
        return w, b

    key, ka, k1, k2, k3 = jax.random.split(key, 5)
    params['attn_w'], params['attn_b'] = linear(ka, 1, 2 * HIDDEN_SIZE)
    params['fc1_w'], params['fc1_b'] = linear(k1, 256, 2 * HIDDEN_SIZE)
    params['fc2_w'], params['fc2_b'] = linear(k2, 128, 256)
    params['fc3_w'], params['fc3_b'] = linear(k3, NUM_CLASSES, 128)
    return params


# ----------------------------- main -------------------------------------------
if __name__ == "__main__":
    key = jax.random.PRNGKey(0)
    key, kx, kp = jax.random.split(key, 3)
    params = init_params(kp)
    pp = preprocess_params(params)      # one-time; not part of the forward path
    x = jax.random.normal(kx, (BATCH, INPUT_DIM), dtype=jnp.float32)

    out = jax.block_until_ready(attention_bilstm_forward(x, pp))
    ref = jax.block_until_ready(reference_forward(x, params))

    assert out.shape == (BATCH, NUM_CLASSES)
    assert jnp.allclose(out, ref, atol=1e-5, rtol=1e-5), (out, ref)
    assert jnp.allclose(jnp.sum(out, axis=1), 1.0, atol=1e-5)

    print("KERNEL_OK")
</pallas_src>

<mosaic_0001>
module attributes {stable_mosaic.version = 11 : i64} {
  func.func @kernel(%arg0: memref<2x64xf32, #tpu.memory_space<vmem>>, %arg1: memref<64x192xf32, #tpu.memory_space<vmem>>, %arg2: memref<1x192xf32, #tpu.memory_space<vmem>>, %arg3: memref<64x192xf32, #tpu.memory_space<vmem>>, %arg4: memref<1x192xf32, #tpu.memory_space<vmem>>, %arg5: memref<64x256xf32, #tpu.memory_space<vmem>>, %arg6: memref<1x256xf32, #tpu.memory_space<vmem>>, %arg7: memref<256x128xf32, #tpu.memory_space<vmem>>, %arg8: memref<1x128xf32, #tpu.memory_space<vmem>>, %arg9: memref<128x128xf32, #tpu.memory_space<vmem>>, %arg10: memref<1x128xf32, #tpu.memory_space<vmem>>, %arg11: memref<2x128xf32, #tpu.memory_space<vmem>>) attributes {dimension_semantics = [], scalar_prefetch = 0 : i64, scratch_operands = 0 : i64, tpu.core_type = #tpu.core_type<tc>} {
    %c0 = arith.constant 0 : index
    %c0_0 = arith.constant 0 : index
    %0 = vector.load %arg0[%c0, %c0_0] : memref<2x64xf32, #tpu.memory_space<vmem>>, vector<2x64xf32>
    %c0_1 = arith.constant 0 : index
    %c0_2 = arith.constant 0 : index
    %1 = vector.load %arg1[%c0_1, %c0_2] : memref<64x192xf32, #tpu.memory_space<vmem>>, vector<64x192xf32>
    %cst = arith.constant dense<0.000000e+00> : vector<2x192xf32>
    %2 = tpu.matmul %0, %1, %cst {dimension_numbers = #tpu.dot_dimension_numbers<[1], [0], [0], [1], [0, 0, 1, 1], [], []>} : vector<2x64xf32>, vector<64x192xf32>, vector<2x192xf32> -> vector<2x192xf32>
    %c0_3 = arith.constant 0 : index
    %c0_4 = arith.constant 0 : index
    %3 = vector.load %arg2[%c0_3, %c0_4] : memref<1x192xf32, #tpu.memory_space<vmem>>, vector<1x192xf32>
    %4 = vector.broadcast %3 : vector<1x192xf32> to vector<2x192xf32>
    %5 = arith.addf %2, %4 : vector<2x192xf32>
    %6 = vector.extract_strided_slice %5 {offsets = [0, 0], sizes = [2, 64], strides = [1, 1]} : vector<2x192xf32> to vector<2x64xf32>
    %7 = arith.negf %6 : vector<2x64xf32>
    %8 = math.exp %7 : vector<2x64xf32>
    %cst_5 = arith.constant 1.000000e+00 : f32
    %9 = vector.broadcast %cst_5 : f32 to vector<2x64xf32>
    %10 = arith.addf %9, %8 : vector<2x64xf32>
    %11 = arith.divf %9, %10 : vector<2x64xf32>
    %12 = vector.extract_strided_slice %5 {offsets = [0, 64], sizes = [2, 64], strides = [1, 1]} : vector<2x192xf32> to vector<2x64xf32>
    %13 = math.tanh %12 : vector<2x64xf32>
    %14 = vector.extract_strided_slice %5 {offsets = [0, 128], sizes = [2, 64], strides = [1, 1]} : vector<2x192xf32> to vector<2x64xf32>
    %15 = arith.negf %14 : vector<2x64xf32>
    %16 = math.exp %15 : vector<2x64xf32>
    %cst_6 = arith.constant 1.000000e+00 : f32
    %17 = vector.broadcast %cst_6 : f32 to vector<2x64xf32>
    %18 = arith.addf %17, %16 : vector<2x64xf32>
    %19 = arith.divf %17, %18 : vector<2x64xf32>
    %20 = arith.mulf %11, %13 : vector<2x64xf32>
    %21 = math.tanh %20 : vector<2x64xf32>
    %22 = arith.mulf %19, %21 : vector<2x64xf32>
    %c0_7 = arith.constant 0 : index
    %c0_8 = arith.constant 0 : index
    %23 = vector.load %arg3[%c0_7, %c0_8] : memref<64x192xf32, #tpu.memory_space<vmem>>, vector<64x192xf32>
    %cst_9 = arith.constant dense<0.000000e+00> : vector<2x192xf32>
    %24 = tpu.matmul %22, %23, %cst_9 {dimension_numbers = #tpu.dot_dimension_numbers<[1], [0], [0], [1], [0, 0, 1, 1], [], []>} : vector<2x64xf32>, vector<64x192xf32>, vector<2x192xf32> -> vector<2x192xf32>
    %c0_10 = arith.constant 0 : index
    %c0_11 = arith.constant 0 : index
    %25 = vector.load %arg4[%c0_10, %c0_11] : memref<1x192xf32, #tpu.memory_space<vmem>>, vector<1x192xf32>
    %26 = vector.broadcast %25 : vector<1x192xf32> to vector<2x192xf32>
    %27 = arith.addf %24, %26 : vector<2x192xf32>
    %28 = vector.extract_strided_slice %27 {offsets = [0, 0], sizes = [2, 64], strides = [1, 1]} : vector<2x192xf32> to vector<2x64xf32>
    %29 = arith.negf %28 : vector<2x64xf32>
    %30 = math.exp %29 : vector<2x64xf32>
    %cst_12 = arith.constant 1.000000e+00 : f32
    %31 = vector.broadcast %cst_12 : f32 to vector<2x64xf32>
    %32 = arith.addf %31, %30 : vector<2x64xf32>
    %33 = arith.divf %31, %32 : vector<2x64xf32>
    %34 = vector.extract_strided_slice %27 {offsets = [0, 64], sizes = [2, 64], strides = [1, 1]} : vector<2x192xf32> to vector<2x64xf32>
    %35 = math.tanh %34 : vector<2x64xf32>
    %36 = vector.extract_strided_slice %27 {offsets = [0, 128], sizes = [2, 64], strides = [1, 1]} : vector<2x192xf32> to vector<2x64xf32>
    %37 = arith.negf %36 : vector<2x64xf32>
    %38 = math.exp %37 : vector<2x64xf32>
    %cst_13 = arith.constant 1.000000e+00 : f32
    %39 = vector.broadcast %cst_13 : f32 to vector<2x64xf32>
    %40 = arith.addf %39, %38 : vector<2x64xf32>
    %41 = arith.divf %39, %40 : vector<2x64xf32>
    %42 = arith.mulf %33, %35 : vector<2x64xf32>
    %43 = math.tanh %42 : vector<2x64xf32>
    %44 = arith.mulf %41, %43 : vector<2x64xf32>
    %c0_14 = arith.constant 0 : index
    %c0_15 = arith.constant 0 : index
    %45 = vector.load %arg5[%c0_14, %c0_15] : memref<64x256xf32, #tpu.memory_space<vmem>>, vector<64x256xf32>
    %cst_16 = arith.constant dense<0.000000e+00> : vector<2x256xf32>
    %46 = tpu.matmul %44, %45, %cst_16 {dimension_numbers = #tpu.dot_dimension_numbers<[1], [0], [0], [1], [0, 0, 1, 1], [], []>} : vector<2x64xf32>, vector<64x256xf32>, vector<2x256xf32> -> vector<2x256xf32>
    %c0_17 = arith.constant 0 : index
    %c0_18 = arith.constant 0 : index
    %47 = vector.load %arg6[%c0_17, %c0_18] : memref<1x256xf32, #tpu.memory_space<vmem>>, vector<1x256xf32>
    %48 = vector.broadcast %47 : vector<1x256xf32> to vector<2x256xf32>
    %49 = arith.addf %46, %48 : vector<2x256xf32>
    %c0_19 = arith.constant 0 : index
    %c0_20 = arith.constant 0 : index
    %50 = vector.load %arg7[%c0_19, %c0_20] : memref<256x128xf32, #tpu.memory_space<vmem>>, vector<256x128xf32>
    %cst_21 = arith.constant dense<0.000000e+00> : vector<2x128xf32>
    %51 = tpu.matmul %49, %50, %cst_21 {dimension_numbers = #tpu.dot_dimension_numbers<[1], [0], [0], [1], [0, 0, 1, 1], [], []>} : vector<2x256xf32>, vector<256x128xf32>, vector<2x128xf32> -> vector<2x128xf32>
    %c0_22 = arith.constant 0 : index
    %c0_23 = arith.constant 0 : index
    %52 = vector.load %arg8[%c0_22, %c0_23] : memref<1x128xf32, #tpu.memory_space<vmem>>, vector<1x128xf32>
    %53 = vector.broadcast %52 : vector<1x128xf32> to vector<2x128xf32>
    %54 = arith.addf %51, %53 : vector<2x128xf32>
    %c0_24 = arith.constant 0 : index
    %c0_25 = arith.constant 0 : index
    %55 = vector.load %arg9[%c0_24, %c0_25] : memref<128x128xf32, #tpu.memory_space<vmem>>, vector<128x128xf32>
    %cst_26 = arith.constant dense<0.000000e+00> : vector<2x128xf32>
    %56 = tpu.matmul %54, %55, %cst_26 {dimension_numbers = #tpu.dot_dimension_numbers<[1], [0], [0], [1], [0, 0, 1, 1], [], []>} : vector<2x128xf32>, vector<128x128xf32>, vector<2x128xf32> -> vector<2x128xf32>
    %c0_27 = arith.constant 0 : index
    %c0_28 = arith.constant 0 : index
    %57 = vector.load %arg10[%c0_27, %c0_28] : memref<1x128xf32, #tpu.memory_space<vmem>>, vector<1x128xf32>
    %58 = vector.broadcast %57 : vector<1x128xf32> to vector<2x128xf32>
    %59 = arith.addf %56, %58 : vector<2x128xf32>
    %cst_29 = arith.constant dense<0xFF800000> : vector<2xf32>
    %60 = vector.multi_reduction <maximumf>, %59, %cst_29 [1] : vector<2x128xf32> to vector<2xf32>
    %cst_30 = arith.constant 0xFF800000 : f32
    %61 = vector.broadcast %cst_30 : f32 to vector<2xf32>
    %62 = arith.maximumf %61, %60 : vector<2xf32>
    %63 = vector.shape_cast %62 : vector<2xf32> to vector<2x1xf32>
    %64 = vector.broadcast %63 : vector<2x1xf32> to vector<2x128xf32>
    %65 = arith.subf %59, %64 : vector<2x128xf32>
    %66 = math.exp %65 : vector<2x128xf32>
    %cst_31 = arith.constant dense<0.000000e+00> : vector<2xf32>
    %67 = vector.multi_reduction <add>, %66, %cst_31 [1] : vector<2x128xf32> to vector<2xf32>
    %68 = vector.shape_cast %67 : vector<2xf32> to vector<2x1xf32>
    %69 = vector.broadcast %68 : vector<2x1xf32> to vector<2x128xf32>
    %70 = arith.divf %66, %69 : vector<2x128xf32>
    %c0_32 = arith.constant 0 : index
    %c0_33 = arith.constant 0 : index
    %71 = vector.load %arg11[%c0_32, %c0_33] : memref<2x128xf32, #tpu.memory_space<vmem>>, vector<2x128xf32>
    tpu.vector_store %arg11[%c0_32, %c0_33], %70 {strides = array<i32>} : memref<2x128xf32, #tpu.memory_space<vmem>>, vector<2x128xf32>,
    return
  }
}

</mosaic_0001>

<llo_original>
// kernel: tpu_custom_call.1
$region0: #{tpu_custom_call.1}
  #allocation0 [shape = 'u32[]', space=smem, size = 0x4, offset = 0x4, fixed_abs, tag = 'smem constant byte address 0x4 - core index']
  #allocation1 [shape = 'u32[72,128]{1,0:T(1,128)}', space=vmem, size = 0x9000, scoped, tag = 'internal scratch']
  %s0 = inlined_call_operand.hbm [shape: f32[2,64], index: 0, kind: input, shape index: {}]
  %s1 = inlined_call_operand.hbm [shape: f32[64,192], index: 1, kind: input, shape index: {}]
  %s2 = inlined_call_operand.hbm [shape: f32[1,192], index: 2, kind: input, shape index: {}]
  %s3 = inlined_call_operand.hbm [shape: f32[64,192], index: 3, kind: input, shape index: {}]
  %s4 = inlined_call_operand.vmem [shape: f32[1,192], index: 4, kind: input, shape index: {}]
  %s5 = inlined_call_operand.hbm [shape: f32[64,256], index: 5, kind: input, shape index: {}]
  %s6 = inlined_call_operand.vmem [shape: f32[1,256], index: 6, kind: input, shape index: {}]
  %s7 = inlined_call_operand.hbm [shape: f32[256,128], index: 7, kind: input, shape index: {}]
  %s8 = inlined_call_operand.vmem [shape: f32[1,128], index: 8, kind: input, shape index: {}]
  %s9 = inlined_call_operand.hbm [shape: f32[128,128], index: 9, kind: input, shape index: {}]
  %s10 = inlined_call_operand.vmem [shape: f32[1,128], index: 10, kind: input, shape index: {}]
  %s11 = inlined_call_operand.hbm [shape: f32[2,128], index: 11, kind: output, shape index: {}]
  %s12 = sld [smem:[#allocation0]]
  $region82: #{tpu_custom_call.1} parent=0
    _
  %s14 = ssub.s32 1, %s12
  %s15 = scalar_select 0, %s14, %s12
  $region1: #{tpu_custom_call.1} parent=0
    #allocation2 [shape = 'u8[1024]{0}', space=vmem, size = 0x400, scoped, tag = 'input window, operand 0, single buffered']
    #allocation3 [shape = 's32[1]{0}', space=sflag, size = 0x4, scoped, tag = 'scoped memory for tpu_custom_call.1']
    #allocation4 [shape = 's32[1]{0}', space=sflag, size = 0x4, scoped, tag = 'scoped memory for tpu_custom_call.1']
    #allocation5 [shape = 'u8[65536]{0}', space=vmem, size = 0x10000, scoped, tag = 'input window, operand 1, single buffered']
    #allocation6 [shape = 's32[1]{0}', space=sflag, size = 0x4, scoped, tag = 'scoped memory for tpu_custom_call.1']
    #allocation7 [shape = 'u8[1024]{0}', space=vmem, size = 0x400, scoped, tag = 'input window, operand 2, single buffered']
    #allocation8 [shape = 'u8[65536]{0}', space=vmem, size = 0x10000, scoped, tag = 'input window, operand 3, single buffered']
    #allocation9 [shape = 's32[1]{0}', space=sflag, size = 0x4, scoped, tag = 'scoped memory for tpu_custom_call.1']
    #allocation10 [shape = 'u8[65536]{0}', space=vmem, size = 0x10000, scoped, tag = 'input window, operand 5, single buffered']
    #allocation11 [shape = 'u8[131072]{0}', space=vmem, size = 0x20000, scoped, tag = 'input window, operand 7, single buffered']
    #allocation12 [shape = 's32[1]{0}', space=sflag, size = 0x4, scoped, tag = 'scoped memory for tpu_custom_call.1']
    #allocation13 [shape = 'u8[65536]{0}', space=vmem, size = 0x10000, scoped, tag = 'input window, operand 9, single buffered']
    #allocation14 [shape = 'u8[1024]{0}', space=vmem, size = 0x400, scoped, tag = 'output window, operand 0, single buffered']
    %16 = vsyncpa [#allocation3], 0
    %17 = vsyncpa [#allocation6], 0
    %18 = vsyncpa [#allocation9], 0
    %19 = vsyncpa [#allocation12], 0
    %20 = vsyncpa [#allocation4], 0
    // Predicated region
    $region2: #{tpu_custom_call.1} parent=1 // pred_check
      _
    $region3: #{tpu_custom_call.1} parent=1 // pred_check_branch
      %22 = sbr.rel (0) target = $region5
    $region4: #{tpu_custom_call.1} parent=1 // pred_region
      %24 = vsyncadd [#allocation3], 0
      %s26 = sshll.u32 %s0, 4
      %s27 = int_to_ptr.hbm [resolvable:$true] %s26
      %s28 = sshll.u32 [#allocation2], 4
      %s29 = int_to_ptr.vmem [resolvable:$true] %s28
      %31 = dma.hbm_to_vmem [thread:$0]  %s27, 32, %s29, [#allocation3]
    $region5: #{tpu_custom_call.1} parent=1 // pred_fallthru
      _
    // Predicated region
    $region6: #{tpu_custom_call.1} parent=1 // pred_check
      _
    $region7: #{tpu_custom_call.1} parent=1 // pred_check_branch
      %33 = sbr.rel (0) target = $region9
    $region8: #{tpu_custom_call.1} parent=1 // pred_region
      %35 = vsyncadd [#allocation6], 0
      %s36 = sshll.u32 %s1, 4
      %s37 = int_to_ptr.hbm [resolvable:$true] %s36
      %s38 = sshll.u32 [#allocation5], 4
      %s39 = int_to_ptr.vmem [resolvable:$true] %s38
      %44 = dma.hbm_to_vmem [thread:$0]  %s37, 2048, %s39, [#allocation6], 256, 256, 16
    $region9: #{tpu_custom_call.1} parent=1 // pred_fallthru
      _
    // Predicated region
    $region10: #{tpu_custom_call.1} parent=1 // pred_check
      _
    $region11: #{tpu_custom_call.1} parent=1 // pred_check_branch
      %46 = sbr.rel (0) target = $region13
    $region12: #{tpu_custom_call.1} parent=1 // pred_region
      %48 = vsyncadd [#allocation6], 0
      %s50 = sshll.u32 %s2, 4
      %s51 = int_to_ptr.hbm [resolvable:$true] %s50
      %s52 = sshll.u32 [#allocation7], 4
      %s53 = int_to_ptr.vmem [resolvable:$true] %s52
      %55 = dma.hbm_to_vmem [thread:$0]  %s51, 32, %s53, [#allocation6]
    $region13: #{tpu_custom_call.1} parent=1 // pred_fallthru
      _
    // Predicated region
    $region14: #{tpu_custom_call.1} parent=1 // pred_check
      _
    $region15: #{tpu_custom_call.1} parent=1 // pred_check_branch
      %57 = sbr.rel (0) target = $region17
    $region16: #{tpu_custom_call.1} parent=1 // pred_region
      %59 = vsyncadd [#allocation9], 0
      %s60 = sshll.u32 %s3, 4
      %s61 = int_to_ptr.hbm [resolvable:$true] %s60
      %s62 = sshll.u32 [#allocation8], 4
      %s63 = int_to_ptr.vmem [resolvable:$true] %s62
      %68 = dma.hbm_to_vmem [thread:$0]  %s61, 2048, %s63, [#allocation9], 256, 256, 16
    $region17: #{tpu_custom_call.1} parent=1 // pred_fallthru
      _
    // Predicated region
    $region18: #{tpu_custom_call.1} parent=1 // pred_check
      _
    $region19: #{tpu_custom_call.1} parent=1 // pred_check_branch
      %70 = sbr.rel (0) target = $region21
    $region20: #{tpu_custom_call.1} parent=1 // pred_region
      _
    $region21: #{tpu_custom_call.1} parent=1 // pred_fallthru
      _
    // Predicated region
    $region22: #{tpu_custom_call.1} parent=1 // pred_check
      _
    $region23: #{tpu_custom_call.1} parent=1 // pred_check_branch
      %72 = sbr.rel (0) target = $region25
    $region24: #{tpu_custom_call.1} parent=1 // pred_region
      %74 = vsyncadd [#allocation9], 0
      %s75 = sshll.u32 %s5, 4
      %s76 = int_to_ptr.hbm [resolvable:$true] %s75
      %s77 = sshll.u32 [#allocation10], 4
      %s78 = int_to_ptr.vmem [resolvable:$true] %s77
      %83 = dma.hbm_to_vmem [thread:$0]  %s76, 2048, %s78, [#allocation9], 256, 256, 16
    $region25: #{tpu_custom_call.1} parent=1 // pred_fallthru
      _
    // Predicated region
    $region26: #{tpu_custom_call.1} parent=1 // pred_check
      _
    $region27: #{tpu_custom_call.1} parent=1 // pred_check_branch
      %85 = sbr.rel (0) target = $region29
    $region28: #{tpu_custom_call.1} parent=1 // pred_region
      _
    $region29: #{tpu_custom_call.1} parent=1 // pred_fallthru
      _
    // Predicated region
    $region30: #{tpu_custom_call.1} parent=1 // pred_check
      _
    $region31: #{tpu_custom_call.1} parent=1 // pred_check_branch
      %87 = sbr.rel (0) target = $region33
    $region32: #{tpu_custom_call.1} parent=1 // pred_region
      %89 = vsyncadd [#allocation12], 0
      %s90 = sshll.u32 %s7, 4
      %s91 = int_to_ptr.hbm [resolvable:$true] %s90
      %s92 = sshll.u32 [#allocation11], 4
      %s93 = int_to_ptr.vmem [resolvable:$true] %s92
      %98 = dma.hbm_to_vmem [thread:$0]  %s91, 4096, %s93, [#allocation12], 128, 128, 8
    $region33: #{tpu_custom_call.1} parent=1 // pred_fallthru
      _
    // Predicated region
    $region34: #{tpu_custom_call.1} parent=1 // pred_check
      _
    $region35: #{tpu_custom_call.1} parent=1 // pred_check_branch
      %100 = sbr.rel (0) target = $region37
    $region36: #{tpu_custom_call.1} parent=1 // pred_region
      _
    $region37: #{tpu_custom_call.1} parent=1 // pred_fallthru
      _
    // Predicated region
    $region38: #{tpu_custom_call.1} parent=1 // pred_check
      _
    $region39: #{tpu_custom_call.1} parent=1 // pred_check_branch
      %102 = sbr.rel (0) target = $region41
    $region40: #{tpu_custom_call.1} parent=1 // pred_region
      %104 = vsyncadd [#allocation12], 0
      %s105 = sshll.u32 %s9, 4
      %s106 = int_to_ptr.hbm [resolvable:$true] %s105
      %s107 = sshll.u32 [#allocation13], 4
      %s108 = int_to_ptr.vmem [resolvable:$true] %s107
      %113 = dma.hbm_to_vmem [thread:$0]  %s106, 2048, %s108, [#allocation12], 128, 128, 8
    $region41: #{tpu_custom_call.1} parent=1 // pred_fallthru
      _
    // Predicated region
    $region42: #{tpu_custom_call.1} parent=1 // pred_check
      _
    $region43: #{tpu_custom_call.1} parent=1 // pred_check_branch
      %115 = sbr.rel (0) target = $region45
    $region44: #{tpu_custom_call.1} parent=1 // pred_region
      _
    $region45: #{tpu_custom_call.1} parent=1 // pred_fallthru
      _
    // Predicated region
    $region46: #{tpu_custom_call.1} parent=1 // pred_check
      _
    $region47: #{tpu_custom_call.1} parent=1 // pred_check_branch
      %117 = sbr.rel (0) target = $region49
    $region48: #{tpu_custom_call.1} parent=1 // pred_region
      %119 = dma.done [#allocation3], 32
    $region49: #{tpu_custom_call.1} parent=1 // pred_fallthru
      _
    // Predicated region
    $region50: #{tpu_custom_call.1} parent=1 // pred_check
      _
    $region51: #{tpu_custom_call.1} parent=1 // pred_check_branch
      %121 = sbr.rel (0) target = $region53
    $region52: #{tpu_custom_call.1} parent=1 // pred_region
      %123 = dma.done [#allocation6], 2048
    $region53: #{tpu_custom_call.1} parent=1 // pred_fallthru
      _
    // Predicated region
    $region54: #{tpu_custom_call.1} parent=1 // pred_check
      _
    $region55: #{tpu_custom_call.1} parent=1 // pred_check_branch
      %125 = sbr.rel (0) target = $region57
    $region56: #{tpu_custom_call.1} parent=1 // pred_region
      %127 = dma.done [#allocation6], 32
    $region57: #{tpu_custom_call.1} parent=1 // pred_fallthru
      _
    // Predicated region
    $region58: #{tpu_custom_call.1} parent=1 // pred_check
      _
    $region59: #{tpu_custom_call.1} parent=1 // pred_check_branch
      %129 = sbr.rel (0) target = $region61
    $region60: #{tpu_custom_call.1} parent=1 // pred_region
      %131 = dma.done [#allocation9], 2048
    $region61: #{tpu_custom_call.1} parent=1 // pred_fallthru
      _
    // Predicated region
    $region62: #{tpu_custom_call.1} parent=1 // pred_check
      _
    $region63: #{tpu_custom_call.1} parent=1 // pred_check_branch
      %133 = sbr.rel (0) target = $region65
    $region64: #{tpu_custom_call.1} parent=1 // pred_region
      %135 = dma.done [#allocation9], 2048
    $region65: #{tpu_custom_call.1} parent=1 // pred_fallthru
      _
    // Predicated region
    $region66: #{tpu_custom_call.1} parent=1 // pred_check
      _
    $region67: #{tpu_custom_call.1} parent=1 // pred_check_branch
      %137 = sbr.rel (0) target = $region69
    $region68: #{tpu_custom_call.1} parent=1 // pred_region
      %139 = dma.done [#allocation12], 4096
    $region69: #{tpu_custom_call.1} parent=1 // pred_fallthru
      _
    // Predicated region
    $region70: #{tpu_custom_call.1} parent=1 // pred_check
      _
    $region71: #{tpu_custom_call.1} parent=1 // pred_check_branch
      %141 = sbr.rel (0) target = $region73
    $region72: #{tpu_custom_call.1} parent=1 // pred_region
      %143 = dma.done [#allocation12], 2048
    $region73: #{tpu_custom_call.1} parent=1 // pred_fallthru
      _
    %v144 = vld [vmem:[#allocation2] sm:$0x3]
    %v145 = vld [vmem:[#allocation5] sm:$0xff]
    %v146 = vld [vmem:[#allocation5 + $0x8] sm:$0xff]
    %v147 = vld [vmem:[#allocation5 + $0x10] sm:$0xff]
    %v148 = vld [vmem:[#allocation5 + $0x18] sm:$0xff]
    %v149 = vld [vmem:[#allocation5 + $0x20] sm:$0xff]
    %v150 = vld [vmem:[#allocation5 + $0x28] sm:$0xff]
    %v151 = vld [vmem:[#allocation5 + $0x30] sm:$0xff]
    %v152 = vld [vmem:[#allocation5 + $0x38] sm:$0xff]
    %v153 = vld [vmem:[#allocation5 + $0x40] sm:$0xff]
    %v154 = vld [vmem:[#allocation5 + $0x48] sm:$0xff]
    %v155 = vld [vmem:[#allocation5 + $0x50] sm:$0xff]
    %v156 = vld [vmem:[#allocation5 + $0x58] sm:$0xff]
    %v157 = vld [vmem:[#allocation5 + $0x60] sm:$0xff]
    %v158 = vld [vmem:[#allocation5 + $0x68] sm:$0xff]
    %v159 = vld [vmem:[#allocation5 + $0x70] sm:$0xff]
    %v160 = vld [vmem:[#allocation5 + $0x78] sm:$0xff]
    %v161 = vld [vmem:[#allocation7] sm:$0x3]
    %v163 = vperm.slane %v161, 0
    %v164 = vperm.slane %v161, 1
    %vm167 = vcmask 523264
    %v169 = vsel %vm167, %v144, 0
    %171 = vmatpush.msra.mxu0 0.0
    %172 = vmatpush.msra.mxu0 0.0
    %173 = vmatpush.msra.mxu0 0.0
    %174 = vmatpush.msra.mxu0 0.0
    %175 = vmatpush.msra.mxu0 0.0
    %176 = vmatpush.msra.mxu0 0.0
    %177 = vmatpush.msra.mxu0 0.0
    %178 = vmatpush.msra.mxu0 0.0
    %179 = vmatpush.msra.mxu0 %v159
    %180 = vmatpush.msra.mxu0 %v157
    %181 = vmatpush.msra.mxu0 %v155
    %182 = vmatpush.msra.mxu0 %v153
    %183 = vmatpush.msra.mxu0 %v151
    %184 = vmatpush.msra.mxu0 %v149
    %185 = vmatpush.msra.mxu0 %v147
    %186 = vmatpush.msra.mxu0 %v145
    %187 = vmatmul.f32.gmra.mxu0 %v169
    %v188 = vpop.f32.mrf.mxu0
    %v189 = vadd.f32 %v163, %v188
    %190 = vdwg.mxu0
    %191 = vmatpush.msra.mxu0 0.0
    %192 = vmatpush.msra.mxu0 0.0
    %193 = vmatpush.msra.mxu0 0.0
    %194 = vmatpush.msra.mxu0 0.0
    %195 = vmatpush.msra.mxu0 0.0
    %196 = vmatpush.msra.mxu0 0.0
    %197 = vmatpush.msra.mxu0 0.0
    %198 = vmatpush.msra.mxu0 0.0
    %199 = vmatpush.msra.mxu0 %v160
    %200 = vmatpush.msra.mxu0 %v158
    %201 = vmatpush.msra.mxu0 %v156
    %202 = vmatpush.msra.mxu0 %v154
    %203 = vmatpush.msra.mxu0 %v152
    %204 = vmatpush.msra.mxu0 %v150
    %205 = vmatpush.msra.mxu0 %v148
    %206 = vmatpush.msra.mxu0 %v146
    %207 = vmatmul.f32.gmra.mxu0 %v169
    %v208 = vpop.f32.mrf.mxu0
    %v209 = vadd.f32 %v164, %v208
    %210 = vdwg.mxu0
    %v211 = vxor.u32 %v189, 2147483648
    %v212 = vmul.f32 %v211, 1.442695
    %v213 = vpow.pop %v212
    %v214 = vadd.f32 %v213, 1.0
    %v215 = vrcp.pop %v214
    %v216 = vmul.f32 %v214, %v215
    %v217 = vsub.f32 1.0, %v216
    %v218 = vmul.f32 %v215, %v217
    %v219 = vadd.f32 %v215, %v218
    %vm220 = vweird.f32 %v214
    %vm221 = vweird.f32 %v215
    %vm222 = vmor %vm220, %vm221
    %v223 = vsel %vm222, %v215, %v219
    %v224 = vand.u32 2147483647, %v214
    %vm225 = vcmp.eq.f32.partialorder %v224, 8.507059e+37
    %v226 = vand.u32 %v214, 2147483648
    %v227 = vor.u32 1.1754944e-38, %v226
    %v228 = vsel %vm225, %v227, %v223
    %v229 = vmul.f32 1.0, %v228
    %v230 = vtanh.pop %v189
    %v231 = vxor.u32 %v209, 2147483648
    %v232 = vmul.f32 %v231, 1.442695
    %v233 = vpow.pop %v232
    %v234 = vadd.f32 %v233, 1.0
    %v235 = vrcp.pop %v234
    %v236 = vmul.f32 %v234, %v235
    %v237 = vsub.f32 1.0, %v236
    %v238 = vmul.f32 %v235, %v237
    %v239 = vadd.f32 %v235, %v238
    %vm240 = vweird.f32 %v234
    %vm241 = vweird.f32 %v235
    %vm242 = vmor %vm240, %vm241
    %v243 = vsel %vm242, %v235, %v239
    %v244 = vand.u32 2147483647, %v234
    %vm245 = vcmp.eq.f32.partialorder %v244, 8.507059e+37
    %v246 = vand.u32 %v234, 2147483648
    %v247 = vor.u32 1.1754944e-38, %v246
    %v248 = vsel %vm245, %v247, %v243
    %v249 = vmul.f32 1.0, %v248
    %251 = vrot.lane.b32.xlu0 %v230, 64
    %v252 = vpop.permute.xlu0 %251
    %v254 = vmul.f32 %v229, %v252
    %v255 = vtanh.pop %v254
    %v256 = vmul.f32 %v249, %v255
    %v257 = vld [vmem:[#allocation8] sm:$0xff]
    %v258 = vld [vmem:[#allocation8 + $0x8] sm:$0xff]
    %v259 = vld [vmem:[#allocation8 + $0x10] sm:$0xff]
    %v260 = vld [vmem:[#allocation8 + $0x18] sm:$0xff]
    %v261 = vld [vmem:[#allocation8 + $0x20] sm:$0xff]
    %v262 = vld [vmem:[#allocation8 + $0x28] sm:$0xff]
    %v263 = vld [vmem:[#allocation8 + $0x30] sm:$0xff]
    %v264 = vld [vmem:[#allocation8 + $0x38] sm:$0xff]
    %v265 = vld [vmem:[#allocation8 + $0x40] sm:$0xff]
    %v266 = vld [vmem:[#allocation8 + $0x48] sm:$0xff]
    %v267 = vld [vmem:[#allocation8 + $0x50] sm:$0xff]
    %v268 = vld [vmem:[#allocation8 + $0x58] sm:$0xff]
    %v269 = vld [vmem:[#allocation8 + $0x60] sm:$0xff]
    %v270 = vld [vmem:[#allocation8 + $0x68] sm:$0xff]
    %v271 = vld [vmem:[#allocation8 + $0x70] sm:$0xff]
    %v272 = vld [vmem:[#allocation8 + $0x78] sm:$0xff]
    %v273 = vld [vmem:[%s4] sm:$0x3]
    %v275 = vperm.slane %v273, 0
    %v276 = vperm.slane %v273, 1
    %v280 = vsel %vm167, %v256, 0
    %282 = vmatpush.msra.mxu0 0.0
    %283 = vmatpush.msra.mxu0 0.0
    %284 = vmatpush.msra.mxu0 0.0
    %285 = vmatpush.msra.mxu0 0.0
    %286 = vmatpush.msra.mxu0 0.0
    %287 = vmatpush.msra.mxu0 0.0
    %288 = vmatpush.msra.mxu0 0.0
    %289 = vmatpush.msra.mxu0 0.0
    %290 = vmatpush.msra.mxu0 %v271
    %291 = vmatpush.msra.mxu0 %v269
    %292 = vmatpush.msra.mxu0 %v267
    %293 = vmatpush.msra.mxu0 %v265
    %294 = vmatpush.msra.mxu0 %v263
    %295 = vmatpush.msra.mxu0 %v261
    %296 = vmatpush.msra.mxu0 %v259
    %297 = vmatpush.msra.mxu0 %v257
    %298 = vmatmul.f32.gmra.mxu0 %v280
    %v299 = vpop.f32.mrf.mxu0
    %v300 = vadd.f32 %v275, %v299
    %301 = vdwg.mxu0
    %302 = vmatpush.msra.mxu0 0.0
    %303 = vmatpush.msra.mxu0 0.0
    %304 = vmatpush.msra.mxu0 0.0
    %305 = vmatpush.msra.mxu0 0.0
    %306 = vmatpush.msra.mxu0 0.0
    %307 = vmatpush.msra.mxu0 0.0
    %308 = vmatpush.msra.mxu0 0.0
    %309 = vmatpush.msra.mxu0 0.0
    %310 = vmatpush.msra.mxu0 %v272
    %311 = vmatpush.msra.mxu0 %v270
    %312 = vmatpush.msra.mxu0 %v268
    %313 = vmatpush.msra.mxu0 %v266
    %314 = vmatpush.msra.mxu0 %v264
    %315 = vmatpush.msra.mxu0 %v262
    %316 = vmatpush.msra.mxu0 %v260
    %317 = vmatpush.msra.mxu0 %v258
    %318 = vmatmul.f32.gmra.mxu0 %v280
    %v319 = vpop.f32.mrf.mxu0
    %v320 = vadd.f32 %v276, %v319
    %321 = vdwg.mxu0
    %v322 = vxor.u32 %v300, 2147483648
    %v323 = vmul.f32 %v322, 1.442695
    %v324 = vpow.pop %v323
    %v325 = vadd.f32 %v324, 1.0
    %v326 = vrcp.pop %v325
    %v327 = vmul.f32 %v325, %v326
    %v328 = vsub.f32 1.0, %v327
    %v329 = vmul.f32 %v326, %v328
    %v330 = vadd.f32 %v326, %v329
    %vm331 = vweird.f32 %v325
    %vm332 = vweird.f32 %v326
    %vm333 = vmor %vm331, %vm332
    %v334 = vsel %vm333, %v326, %v330
    %v335 = vand.u32 2147483647, %v325
    %vm336 = vcmp.eq.f32.partialorder %v335, 8.507059e+37
    %v337 = vand.u32 %v325, 2147483648
    %v338 = vor.u32 1.1754944e-38, %v337
    %v339 = vsel %vm336, %v338, %v334
    %v340 = vmul.f32 1.0, %v339
    %v341 = vtanh.pop %v300
    %v342 = vxor.u32 %v320, 2147483648
    %v343 = vmul.f32 %v342, 1.442695
    %v344 = vpow.pop %v343
    %v345 = vadd.f32 %v344, 1.0
    %v346 = vrcp.pop %v345
    %v347 = vmul.f32 %v345, %v346
    %v348 = vsub.f32 1.0, %v347
    %v349 = vmul.f32 %v346, %v348
    %v350 = vadd.f32 %v346, %v349
    %vm351 = vweird.f32 %v345
    %vm352 = vweird.f32 %v346
    %vm353 = vmor %vm351, %vm352
    %v354 = vsel %vm353, %v346, %v350
    %v355 = vand.u32 2147483647, %v345
    %vm356 = vcmp.eq.f32.partialorder %v355, 8.507059e+37
    %v357 = vand.u32 %v345, 2147483648
    %v358 = vor.u32 1.1754944e-38, %v357
    %v359 = vsel %vm356, %v358, %v354
    %v360 = vmul.f32 1.0, %v359
    %362 = vrot.lane.b32.xlu0 %v341, 64
    %v363 = vpop.permute.xlu0 %362
    %v365 = vmul.f32 %v340, %v363
    %v366 = vtanh.pop %v365
    %v367 = vmul.f32 %v360, %v366
    %v368 = vld [vmem:[#allocation10] sm:$0xff]
    %v369 = vld [vmem:[#allocation10 + $0x8] sm:$0xff]
    %v370 = vld [vmem:[#allocation10 + $0x10] sm:$0xff]
    %v371 = vld [vmem:[#allocation10 + $0x18] sm:$0xff]
    %v372 = vld [vmem:[#allocation10 + $0x20] sm:$0xff]
    %v373 = vld [vmem:[#allocation10 + $0x28] sm:$0xff]
    %v374 = vld [vmem:[#allocation10 + $0x30] sm:$0xff]
    %v375 = vld [vmem:[#allocation10 + $0x38] sm:$0xff]
    %v376 = vld [vmem:[#allocation10 + $0x40] sm:$0xff]
    %v377 = vld [vmem:[#allocation10 + $0x48] sm:$0xff]
    %v378 = vld [vmem:[#allocation10 + $0x50] sm:$0xff]
    %v379 = vld [vmem:[#allocation10 + $0x58] sm:$0xff]
    %v380 = vld [vmem:[#allocation10 + $0x60] sm:$0xff]
    %v381 = vld [vmem:[#allocation10 + $0x68] sm:$0xff]
    %v382 = vld [vmem:[#allocation10 + $0x70] sm:$0xff]
    %v383 = vld [vmem:[#allocation10 + $0x78] sm:$0xff]
    %v384 = vld [vmem:[%s6] sm:$0x3]
    %v386 = vperm.slane %v384, 0
    %v387 = vperm.slane %v384, 1
    %v391 = vsel %vm167, %v367, 0
    %393 = vmatpush.msra.mxu0 0.0
    %394 = vmatpush.msra.mxu0 0.0
    %395 = vmatpush.msra.mxu0 0.0
    %396 = vmatpush.msra.mxu0 0.0
    %397 = vmatpush.msra.mxu0 0.0
    %398 = vmatpush.msra.mxu0 0.0
    %399 = vmatpush.msra.mxu0 0.0
    %400 = vmatpush.msra.mxu0 0.0
    %401 = vmatpush.msra.mxu0 %v382
    %402 = vmatpush.msra.mxu0 %v380
    %403 = vmatpush.msra.mxu0 %v378
    %404 = vmatpush.msra.mxu0 %v376
    %405 = vmatpush.msra.mxu0 %v374
    %406 = vmatpush.msra.mxu0 %v372
    %407 = vmatpush.msra.mxu0 %v370
    %408 = vmatpush.msra.mxu0 %v368
    %409 = vmatmul.f32.gmra.mxu0 %v391
    %v410 = vpop.f32.mrf.mxu0
    %v411 = vadd.f32 %v386, %v410
    %412 = vdwg.mxu0
    %413 = vmatpush.msra.mxu0 0.0
    %414 = vmatpush.msra.mxu0 0.0
    %415 = vmatpush.msra.mxu0 0.0
    %416 = vmatpush.msra.mxu0 0.0
    %417 = vmatpush.msra.mxu0 0.0
    %418 = vmatpush.msra.mxu0 0.0
    %419 = vmatpush.msra.mxu0 0.0
    %420 = vmatpush.msra.mxu0 0.0
    %421 = vmatpush.msra.mxu0 %v383
    %422 = vmatpush.msra.mxu0 %v381
    %423 = vmatpush.msra.mxu0 %v379
    %424 = vmatpush.msra.mxu0 %v377
    %425 = vmatpush.msra.mxu0 %v375
    %426 = vmatpush.msra.mxu0 %v373
    %427 = vmatpush.msra.mxu0 %v371
    %428 = vmatpush.msra.mxu0 %v369
    %429 = vmatmul.f32.gmra.mxu0 %v391
    %v430 = vpop.f32.mrf.mxu0
    %v431 = vadd.f32 %v387, %v430
    %432 = vdwg.mxu0
    %v433 = vld [vmem:[#allocation11] sm:$0xff]
    %v434 = vld [vmem:[#allocation11 + $0x8] sm:$0xff]
    %v435 = vld [vmem:[#allocation11 + $0x10] sm:$0xff]
    %v436 = vld [vmem:[#allocation11 + $0x18] sm:$0xff]
    %v437 = vld [vmem:[#allocation11 + $0x20] sm:$0xff]
    %v438 = vld [vmem:[#allocation11 + $0x28] sm:$0xff]
    %v439 = vld [vmem:[#allocation11 + $0x30] sm:$0xff]
    %v440 = vld [vmem:[#allocation11 + $0x38] sm:$0xff]
    %v441 = vld [vmem:[#allocation11 + $0x40] sm:$0xff]
    %v442 = vld [vmem:[#allocation11 + $0x48] sm:$0xff]
    %v443 = vld [vmem:[#allocation11 + $0x50] sm:$0xff]
    %v444 = vld [vmem:[#allocation11 + $0x58] sm:$0xff]
    %v445 = vld [vmem:[#allocation11 + $0x60] sm:$0xff]
    %v446 = vld [vmem:[#allocation11 + $0x68] sm:$0xff]
    %v447 = vld [vmem:[#allocation11 + $0x70] sm:$0xff]
    %v448 = vld [vmem:[#allocation11 + $0x78] sm:$0xff]
    %v449 = vld [vmem:[#allocation11 + $0x80] sm:$0xff]
    %v450 = vld [vmem:[#allocation11 + $0x88] sm:$0xff]
    %v451 = vld [vmem:[#allocation11 + $0x90] sm:$0xff]
    %v452 = vld [vmem:[#allocation11 + $0x98] sm:$0xff]
    %v453 = vld [vmem:[#allocation11 + $0xa0] sm:$0xff]
    %v454 = vld [vmem:[#allocation11 + $0xa8] sm:$0xff]
    %v455 = vld [vmem:[#allocation11 + $0xb0] sm:$0xff]
    %v456 = vld [vmem:[#allocation11 + $0xb8] sm:$0xff]
    %v457 = vld [vmem:[#allocation11 + $0xc0] sm:$0xff]
    %v458 = vld [vmem:[#allocation11 + $0xc8] sm:$0xff]
    %v459 = vld [vmem:[#allocation11 + $0xd0] sm:$0xff]
    %v460 = vld [vmem:[#allocation11 + $0xd8] sm:$0xff]
    %v461 = vld [vmem:[#allocation11 + $0xe0] sm:$0xff]
    %v462 = vld [vmem:[#allocation11 + $0xe8] sm:$0xff]
    %v463 = vld [vmem:[#allocation11 + $0xf0] sm:$0xff]
    %v464 = vld [vmem:[#allocation11 + $0xf8] sm:$0xff]
    %v465 = vld [vmem:[%s8] sm:$0x1]
    %v467 = vperm.slane %v465, 0
    %469 = vmatpush.msra.mxu0 %v448
    %470 = vmatpush.msra.mxu0 %v447
    %471 = vmatpush.msra.mxu0 %v446
    %472 = vmatpush.msra.mxu0 %v445
    %473 = vmatpush.msra.mxu0 %v444
    %474 = vmatpush.msra.mxu0 %v443
    %475 = vmatpush.msra.mxu0 %v442
    %476 = vmatpush.msra.mxu0 %v441
    %477 = vmatpush.msra.mxu0 %v440
    %478 = vmatpush.msra.mxu0 %v439
    %479 = vmatpush.msra.mxu0 %v438
    %480 = vmatpush.msra.mxu0 %v437
    %481 = vmatpush.msra.mxu0 %v436
    %482 = vmatpush.msra.mxu0 %v435
    %483 = vmatpush.msra.mxu0 %v434
    %484 = vmatpush.msra.mxu0 %v433
    %485 = vmatmul.f32.gmra.mxu0 %v411
    %v486 = vpop.f32.mrf.mxu0
    %v487 = vadd.f32 %v467, %v486
    %488 = vdwg.mxu0
    %489 = vmatpush.msra.mxu0 %v464
    %490 = vmatpush.msra.mxu0 %v463
    %491 = vmatpush.msra.mxu0 %v462
    %492 = vmatpush.msra.mxu0 %v461
    %493 = vmatpush.msra.mxu0 %v460
    %494 = vmatpush.msra.mxu0 %v459
    %495 = vmatpush.msra.mxu0 %v458
    %496 = vmatpush.msra.mxu0 %v457
    %497 = vmatpush.msra.mxu0 %v456
    %498 = vmatpush.msra.mxu0 %v455
    %499 = vmatpush.msra.mxu0 %v454
    %500 = vmatpush.msra.mxu0 %v453
    %501 = vmatpush.msra.mxu0 %v452
    %502 = vmatpush.msra.mxu0 %v451
    %503 = vmatpush.msra.mxu0 %v450
    %504 = vmatpush.msra.mxu0 %v449
    %505 = vmatmul.f32.gmra.mxu0 %v431
    %v506 = vpop.f32.mrf.mxu0
    %v507 = vadd.f32 %v487, %v506
    %508 = vdwg.mxu0
    %v509 = vld [vmem:[#allocation13] sm:$0xff]
    %v510 = vld [vmem:[#allocation13 + $0x8] sm:$0xff]
    %v511 = vld [vmem:[#allocation13 + $0x10] sm:$0xff]
    %v512 = vld [vmem:[#allocation13 + $0x18] sm:$0xff]
    %v513 = vld [vmem:[#allocation13 + $0x20] sm:$0xff]
    %v514 = vld [vmem:[#allocation13 + $0x28] sm:$0xff]
    %v515 = vld [vmem:[#allocation13 + $0x30] sm:$0xff]
    %v516 = vld [vmem:[#allocation13 + $0x38] sm:$0xff]
    %v517 = vld [vmem:[#allocation13 + $0x40] sm:$0xff]
    %v518 = vld [vmem:[#allocation13 + $0x48] sm:$0xff]
    %v519 = vld [vmem:[#allocation13 + $0x50] sm:$0xff]
    %v520 = vld [vmem:[#allocation13 + $0x58] sm:$0xff]
    %v521 = vld [vmem:[#allocation13 + $0x60] sm:$0xff]
    %v522 = vld [vmem:[#allocation13 + $0x68] sm:$0xff]
    %v523 = vld [vmem:[#allocation13 + $0x70] sm:$0xff]
    %v524 = vld [vmem:[#allocation13 + $0x78] sm:$0xff]
    %v525 = vld [vmem:[%s10] sm:$0x1]
    %v527 = vperm.slane %v525, 0
    %529 = vmatpush.msra.mxu0 %v524
    %530 = vmatpush.msra.mxu0 %v523
    %531 = vmatpush.msra.mxu0 %v522
    %532 = vmatpush.msra.mxu0 %v521
    %533 = vmatpush.msra.mxu0 %v520
    %534 = vmatpush.msra.mxu0 %v519
    %535 = vmatpush.msra.mxu0 %v518
    %536 = vmatpush.msra.mxu0 %v517
    %537 = vmatpush.msra.mxu0 %v516
    %538 = vmatpush.msra.mxu0 %v515
    %539 = vmatpush.msra.mxu0 %v514
    %540 = vmatpush.msra.mxu0 %v513
    %541 = vmatpush.msra.mxu0 %v512
    %542 = vmatpush.msra.mxu0 %v511
    %543 = vmatpush.msra.mxu0 %v510
    %544 = vmatpush.msra.mxu0 %v509
    %545 = vmatmul.f32.gmra.mxu0 %v507
    %v546 = vpop.f32.mrf.mxu0
    %v547 = vadd.f32 %v527, %v546
    %548 = vdwg.mxu0
    %vm549 = vcmask 1041408
    %v550 = vsel %vm549, %v547, -inf
    %551 = vmax.xlane.f32.xlu0 %v550
    %v552 = vpop.xlane.xlu0 %551
    %v553 = vsub.f32 %v547, %v552
    %v554 = vmul.f32 %v553, 1.442695
    %v555 = vpow.pop %v554
    %v556 = vsel %vm549, %v555, 0.0
    %557 = vadd.xlane.f32.xlu0 %v556
    %v558 = vpop.xlane.xlu0 %557
    %v559 = vrcp.pop %v558
    %v560 = vmul.f32 %v558, %v559
    %v561 = vsub.f32 1.0, %v560
    %v562 = vmul.f32 %v559, %v561
    %v563 = vadd.f32 %v559, %v562
    %vm564 = vweird.f32 %v558
    %vm565 = vweird.f32 %v559
    %vm566 = vmor %vm564, %vm565
    %v567 = vsel %vm566, %v559, %v563
    %v568 = vand.u32 2147483647, %v558
    %vm569 = vcmp.eq.f32.partialorder %v568, 8.507059e+37
    %v570 = vand.u32 %v558, 2147483648
    %v571 = vor.u32 1.1754944e-38, %v570
    %v572 = vsel %vm569, %v571, %v567
    %v573 = vmul.f32 %v555, %v572
    %574 = vst [vmem:[#allocation14] sm:$0x3] %v573
    // Predicated region
    $region74: #{tpu_custom_call.1} parent=1 // pred_check
      _
    $region75: #{tpu_custom_call.1} parent=1 // pred_check_branch
      %576 = sbr.rel (0) target = $region77
    $region76: #{tpu_custom_call.1} parent=1 // pred_region
      %578 = vsyncadd [#allocation4], 0
      %s580 = sshll.u32 [#allocation14], 4
      %s581 = int_to_ptr.vmem [resolvable:$true] %s580
      %s582 = sshll.u32 %s11, 4
      %s583 = int_to_ptr.hbm [resolvable:$true] %s582
      %585 = dma.vmem_to_hbm [thread:$0]  %s581, 32, %s583, [#allocation4]
    $region77: #{tpu_custom_call.1} parent=1 // pred_fallthru
      _
    // Predicated region
    $region78: #{tpu_custom_call.1} parent=1 // pred_check
      _
    $region79: #{tpu_custom_call.1} parent=1 // pred_check_branch
      %587 = sbr.rel (0) target = $region81
    $region80: #{tpu_custom_call.1} parent=1 // pred_region
      %589 = dma.done [#allocation4], 32
    $region81: #{tpu_custom_call.1} parent=1 // pred_fallthru
      _
    %590 = vsyncpa [#allocation3], 1
    %591 = vsyncpa [#allocation6], 1
    %592 = vsyncpa [#allocation9], 1
    %593 = vsyncpa [#allocation12], 1
    %594 = vsyncpa [#allocation4], 1

</llo_original>
